<compile_context>
chip_gen: v5e
topology: v5e:2x2
jax: 0.10.0
libtpu: 0.0.40
codegen_flags: <defaults>
</compile_context>

<pallas_src>
import functools
import math

import jax
import jax.numpy as jnp
import numpy as np
from jax import lax
from jax.experimental import pallas as pl
from jax.experimental.pallas import tpu as pltpu


_TARGET_STEP_BYTES = 2 << 20      # aim for >= ~2 MiB of input per grid step
_MAX_ROW_TILE = 8192


# ---------------------------------------------------------------------------
# Tile sizing helpers.
# ---------------------------------------------------------------------------
def _cdiv(a, b):
    return -(-a // b)


def _device_kind():
    try:
        return jax.devices()[0].device_kind.lower()
    except Exception:
        return ""


def _vmem_budget():
    """(vmem_limit_bytes, per-tile working-set budget) per chip generation."""
    try:
        cap = int(pltpu.get_tpu_info().vmem_capacity_bytes)
    except Exception:
        cap = 64 << 20                      # conservative (v7x-sized) default
    # 100 MiB scoped limit on 128 MiB parts (v5e/v6e), cap-14 MiB (= 50 MiB) on
    # v7x so large-C tiles are not halved against its 3.2 TB/s HBM.
    vmem_limit = min(100 << 20, cap - (14 << 20))
    tile_budget = (vmem_limit * 17) // 20   # 85% of the scoped limit
    return vmem_limit, tile_budget


def _bytes_per_elem(itemsize):
    # 2x double-buffered input + 2x double-buffered output + ~1 f32 tile temp.
    return 4 * itemsize + 4


def _sublane_granule(dtype):
    # Native sublane tile: 8 for f32, 16 for bf16/f16, 32 for int8/fp8.
    return max(8, 32 // np.dtype(dtype).itemsize)


def _pick_row_tile(extent, row_bytes, tile_budget, granule):
    """Largest sublane tile (multiple of `granule`, <= extent) within budget."""
    if extent <= granule:
        return extent
    best = granule
    cand = granule
    cap = min(extent, _MAX_ROW_TILE)
    while cand * 2 <= cap and (cand * 2) * row_bytes <= tile_budget:
        cand *= 2
        best = cand
    return best


def _pick_lane_tile(extent, col_bytes, tile_budget):
    """Largest lane tile (multiple of 128, <= extent) within budget."""
    if extent <= 128:
        return extent
    best = 128
    cand = 128
    cap = min(extent, _MAX_ROW_TILE)
    while cand * 2 <= cap and (cand * 2) * col_bytes <= tile_budget:
        cand *= 2
        best = cand
    return best


def _split_for_two_steps(extent, tile, granule):
    """Smaller tile giving >=2 grid steps (keeps both v7x TensorCores busy)."""
    if extent <= granule or _cdiv(extent, tile) >= 2:
        return None
    new_tile = min(tile, _cdiv(_cdiv(extent, 2), granule) * granule)
    if new_tile >= granule and _cdiv(extent, new_tile) >= 2:
        return new_tile
    return None


# ---------------------------------------------------------------------------
# channels_last, generic lane-dense path: normalize the last dim of (TR, C).
# ---------------------------------------------------------------------------
def _ln_cl_kernel(x_ref, w_ref, b_ref, o_ref, *, eps):
    x = x_ref[...].astype(jnp.float32)                      # (TR, C)
    u = jnp.mean(x, axis=-1, keepdims=True)
    d = x - u
    s = jnp.mean(d * d, axis=-1, keepdims=True)             # biased variance
    inv = lax.rsqrt(s + eps)                                 # EUP, reduced shape
    w = w_ref[...].astype(jnp.float32)                       # (1, C)
    b = b_ref[...].astype(jnp.float32)
    o_ref[...] = (d * inv * w + b).astype(o_ref.dtype)


# ---------------------------------------------------------------------------
# channels_last, lane-packed path: k rows share L = lcm(C, 128) lanes; segment
# sums via a block-diagonal 0/1 matrix on the MXU, scaled by 1/C in f32.
# ---------------------------------------------------------------------------
def _seg_sum(v, smat, exact):
    # f32-accurate v @ smat even when the MXU truncates f32 operands to bf16:
    # smat entries are 0/1 (exact in bf16); the data gets a hi/lo split unless
    # it is already exactly bf16-representable (then the lo matmul is skipped).
    if exact:
        return jnp.dot(v, smat, preferred_element_type=jnp.float32)
    hi = v.astype(jnp.bfloat16).astype(jnp.float32)
    lo = v - hi
    return (jnp.dot(hi, smat, preferred_element_type=jnp.float32)
            + jnp.dot(lo, smat, preferred_element_type=jnp.float32))


def _ln_cl_packed_kernel(x_ref, w_ref, b_ref, s_ref, o_ref, *, eps, inv_c,
                         x_exact):
    x = x_ref[...].astype(jnp.float32)                      # (TR, L)
    smat = s_ref[...]                                        # (L, L) 0/1
    u = _seg_sum(x, smat, x_exact) * inv_c                   # per-segment mean
    d = x - u
    s = _seg_sum(d * d, smat, False) * inv_c                 # biased variance
    inv = lax.rsqrt(s + eps)
    w = w_ref[...].astype(jnp.float32)                       # (1, L)
    b = b_ref[...].astype(jnp.float32)
    o_ref[...] = (d * inv * w + b).astype(o_ref.dtype)


def layer_norm_channels_last(x, weight, bias, eps=1e-6):
    """x: (..., C); weight, bias: (C,)."""
    orig_shape = x.shape
    C = int(orig_shape[-1])
    R = int(np.prod(orig_shape[:-1])) if len(orig_shape) > 1 else 1
    vmem_limit, tile_budget = _vmem_budget()
    itemsize = np.dtype(x.dtype).itemsize
    cost = _bytes_per_elem(itemsize)
    granule = _sublane_granule(x.dtype)

    # Lane packing: k = 128/gcd(C,128) rows per L = lcm(C,128) lanes.  On v5e
    # the MXU roofline only leaves headroom for L = 128 (divisor C); v6e/v7x
    # also take L = 384 (e.g. C = 96, 192).
    l_cap = 128 if "v5" in _device_kind() else 384
    k = 128 // math.gcd(C, 128)
    L = C * k
    packed = (k >= 2) and (L <= l_cap) and (R >= k)

    if packed:
        x2 = x.reshape(R, C)
        padded = (R % k) != 0
        Rp = _cdiv(R, k) * k
        if padded:
            # TODO(synk): ragged tail still costs one pad + one slice HBM pass;
            # only hit when R % k != 0 (rare for conv feature maps).
            x2 = jnp.pad(x2, ((0, Rp - R), (0, 0)))
        n_rows = Rp // k
        xp = x2.reshape(n_rows, L)
        w2 = jnp.tile(jnp.reshape(weight, (1, C)), (1, k))   # lane l -> w[l % C]
        b2 = jnp.tile(jnp.reshape(bias, (1, C)), (1, k))
        seg = np.arange(L) // C
        smat = jnp.asarray((seg[:, None] == seg[None, :]).astype(np.float32))
        x_exact = bool(x.dtype == jnp.bfloat16) or (
            jnp.issubdtype(x.dtype, jnp.integer) and itemsize == 1)

        tile_r = _pick_row_tile(n_rows, L * cost, tile_budget, granule)
        new = _split_for_two_steps(n_rows, tile_r, granule)
        if new is not None:
            tile_r = new
        grid = (_cdiv(n_rows, tile_r),)
        out = pl.pallas_call(
            functools.partial(_ln_cl_packed_kernel, eps=eps, inv_c=1.0 / C,
                              x_exact=x_exact),
            out_shape=jax.ShapeDtypeStruct((n_rows, L), x.dtype),
            grid_spec=pltpu.PrefetchScalarGridSpec(
                num_scalar_prefetch=0,
                grid=grid,
                in_specs=[
                    pl.BlockSpec((tile_r, L), lambda i: (i, 0)),
                    pl.BlockSpec((1, L), lambda i: (0, 0)),
                    pl.BlockSpec((1, L), lambda i: (0, 0)),
                    pl.BlockSpec((L, L), lambda i: (0, 0)),
                ],
                out_specs=pl.BlockSpec((tile_r, L), lambda i: (i, 0)),
            ),
            compiler_params=pltpu.CompilerParams(
                dimension_semantics=("parallel",),
                vmem_limit_bytes=vmem_limit),
        )(xp, w2, b2, smat)
        out = out.reshape(Rp, C)
        if padded:
            out = out[:R]
        return out.reshape(orig_shape)

    # Generic lane-dense path.
    x2 = x.reshape(R, C)
    w2 = jnp.reshape(weight, (1, C))
    b2 = jnp.reshape(bias, (1, C))
    tile_r = _pick_row_tile(R, C * cost, tile_budget, granule)
    new = _split_for_two_steps(R, tile_r, granule)
    if new is not None:
        tile_r = new
    grid = (_cdiv(R, tile_r),)
    out = pl.pallas_call(
        functools.partial(_ln_cl_kernel, eps=eps),
        out_shape=jax.ShapeDtypeStruct((R, C), x.dtype),
        grid_spec=pltpu.PrefetchScalarGridSpec(
            num_scalar_prefetch=0,
            grid=grid,
            in_specs=[
                pl.BlockSpec((tile_r, C), lambda i: (i, 0)),
                pl.BlockSpec((1, C), lambda i: (0, 0)),
                pl.BlockSpec((1, C), lambda i: (0, 0)),
            ],
            out_specs=pl.BlockSpec((tile_r, C), lambda i: (i, 0)),
        ),
        compiler_params=pltpu.CompilerParams(
            dimension_semantics=("parallel",),
            vmem_limit_bytes=vmem_limit),
    )(x2, w2, b2)
    return out.reshape(orig_shape)


# ---------------------------------------------------------------------------
# channels_first, spatial-minor path: block (TN, C, T_hwb, 128), reduce over C
# with plain VPU adds across full vregs (dense lanes/sublanes for any C).
# ---------------------------------------------------------------------------
def _sum_over_channels(x, c):
    acc = x[:, 0:1]
    for i in range(1, c):
        acc = acc + x[:, i:i + 1]
    return acc


def _ln_cf_spatial_kernel(x_ref, w_ref, b_ref, o_ref, *, eps, c):
    x = x_ref[...].astype(jnp.float32)                      # (TN, C, T_hwb, 128)
    inv_c = 1.0 / c
    u = _sum_over_channels(x, c) * inv_c                     # (TN, 1, T_hwb, 128)
    d = x - u
    s = _sum_over_channels(d * d, c) * inv_c                 # biased variance
    inv = lax.rsqrt(s + eps)
    w = w_ref[...].astype(jnp.float32)                       # (1, C, 1, 128)
    b = b_ref[...].astype(jnp.float32)
    o_ref[...] = (w * (d * inv) + b).astype(o_ref.dtype)


# channels_first, sublane fallback: block (TN, C, T_hw), reduce over sublanes.
def _ln_cf_sublane_kernel(x_ref, w_ref, b_ref, o_ref, *, eps):
    x = x_ref[...].astype(jnp.float32)                      # (TN, C, T_hw)
    u = jnp.mean(x, axis=1, keepdims=True)
    d = x - u
    s = jnp.mean(d * d, axis=1, keepdims=True)
    inv = lax.rsqrt(s + eps)
    w = w_ref[...].astype(jnp.float32)                       # (1, C, 1)
    b = b_ref[...].astype(jnp.float32)
    o_ref[...] = (w * (d * inv) + b).astype(o_ref.dtype)


def layer_norm_channels_first(x, weight, bias, eps=1e-6):
    """x: (N, C, H, W); weight, bias: (C,)."""
    N, C, H, W = (int(d) for d in x.shape)
    HW = H * W
    vmem_limit, tile_budget = _vmem_budget()
    itemsize = np.dtype(x.dtype).itemsize
    cost = _bytes_per_elem(itemsize)
    granule = _sublane_granule(x.dtype)

    if HW % 128 == 0 and C <= 64:
        # Spatial-minor layout: minor two dims are (spatial-blocks, 128), so
        # vregs are dense and stores unmasked even for tiny C.
        HWb = HW // 128
        x4 = x.reshape(N, C, HWb, 128)
        w4 = jnp.broadcast_to(jnp.reshape(weight, (1, C, 1, 1)), (1, C, 1, 128))
        b4 = jnp.broadcast_to(jnp.reshape(bias, (1, C, 1, 1)), (1, C, 1, 128))

        t_hwb = _pick_row_tile(HWb, C * 128 * cost, tile_budget, granule)
        slab_in = C * t_hwb * 128 * itemsize
        slab_cost = C * t_hwb * 128 * cost
        tn = max(1, min(N, _TARGET_STEP_BYTES // max(1, slab_in)))
        tn = max(1, min(tn, tile_budget // max(1, slab_cost)))
        if _cdiv(N, tn) * _cdiv(HWb, t_hwb) == 1:
            new = _split_for_two_steps(HWb, t_hwb, granule)
            if new is not None:
                t_hwb = new
            else:
                new = _split_for_two_steps(N, tn, 1)
                if new is not None:
                    tn = new
        grid = (_cdiv(N, tn), _cdiv(HWb, t_hwb))
        out = pl.pallas_call(
            functools.partial(_ln_cf_spatial_kernel, eps=eps, c=C),
            out_shape=jax.ShapeDtypeStruct((N, C, HWb, 128), x.dtype),
            grid_spec=pltpu.PrefetchScalarGridSpec(
                num_scalar_prefetch=0,
                grid=grid,
                in_specs=[
                    pl.BlockSpec((tn, C, t_hwb, 128), lambda n, t: (n, 0, t, 0)),
                    pl.BlockSpec((1, C, 1, 128), lambda n, t: (0, 0, 0, 0)),
                    pl.BlockSpec((1, C, 1, 128), lambda n, t: (0, 0, 0, 0)),
                ],
                out_specs=pl.BlockSpec((tn, C, t_hwb, 128),
                                       lambda n, t: (n, 0, t, 0)),
            ),
            compiler_params=pltpu.CompilerParams(
                dimension_semantics=("parallel", "parallel"),
                vmem_limit_bytes=vmem_limit),
        )(x4, w4, b4)
        return out.reshape(N, C, H, W)

    # Fallback: channels on the sublane axis (dense when C is a multiple of
    # the native sublane tile; used when HW is not 128-aligned or C is large).
    x3 = x.reshape(N, C, HW)
    w3 = jnp.reshape(weight, (1, C, 1))
    b3 = jnp.reshape(bias, (1, C, 1))
    t_hw = _pick_lane_tile(HW, C * cost, tile_budget)
    slab_in = C * t_hw * itemsize
    slab_cost = C * t_hw * cost
    tn = max(1, min(N, _TARGET_STEP_BYTES // max(1, slab_in)))
    tn = max(1, min(tn, tile_budget // max(1, slab_cost)))
    if _cdiv(N, tn) * _cdiv(HW, t_hw) == 1:
        new = _split_for_two_steps(HW, t_hw, 128)
        if new is not None:
            t_hw = new
        else:
            new = _split_for_two_steps(N, tn, 1)
            if new is not None:
                tn = new
    grid = (_cdiv(N, tn), _cdiv(HW, t_hw))
    out = pl.pallas_call(
        functools.partial(_ln_cf_sublane_kernel, eps=eps),
        out_shape=jax.ShapeDtypeStruct((N, C, HW), x.dtype),
        grid_spec=pltpu.PrefetchScalarGridSpec(
            num_scalar_prefetch=0,
            grid=grid,
            in_specs=[
                pl.BlockSpec((tn, C, t_hw), lambda n, t: (n, 0, t)),
                pl.BlockSpec((1, C, 1), lambda n, t: (0, 0, 0)),
                pl.BlockSpec((1, C, 1), lambda n, t: (0, 0, 0)),
            ],
            out_specs=pl.BlockSpec((tn, C, t_hw), lambda n, t: (n, 0, t)),
        ),
        compiler_params=pltpu.CompilerParams(
            dimension_semantics=("parallel", "parallel"),
            vmem_limit_bytes=vmem_limit),
    )(x3, w3, b3)
    return out.reshape(N, C, H, W)


# ---------------------------------------------------------------------------
# Pure-JAX references (mirror the PyTorch module exactly).
# ---------------------------------------------------------------------------
def _ref_channels_last(x, w, b, eps):
    u = jnp.mean(x, axis=-1, keepdims=True)
    s = jnp.mean((x - u) ** 2, axis=-1, keepdims=True)
    return (x - u) / jnp.sqrt(s + eps) * w + b


def _ref_channels_first(x, w, b, eps):
    u = jnp.mean(x, axis=1, keepdims=True)
    s = jnp.mean((x - u) ** 2, axis=1, keepdims=True)
    xh = (x - u) / jnp.sqrt(s + eps)
    return w[None, :, None, None] * xh + b[None, :, None, None]


if __name__ == "__main__":
    key = jax.random.PRNGKey(0)
    k1, k2, k3, k4, k5 = jax.random.split(key, 5)

    eps = 1e-6
    N, C, H, W = 2, 4, 16, 16

    weight = jnp.ones((C,), jnp.float32) + 0.1 * jax.random.normal(k3, (C,))
    bias = jnp.zeros((C,), jnp.float32) + 0.1 * jax.random.normal(k4, (C,))

    # --- channels_first (NCHW), HW % 128 == 0 -> spatial-minor kernel ---
    x_cf = jax.random.normal(k1, (N, C, H, W), jnp.float32)
    out_cf = jax.block_until_ready(
        layer_norm_channels_first(x_cf, weight, bias, eps))
    ref_cf = _ref_channels_first(x_cf, weight, bias, eps)
    assert np.allclose(np.asarray(out_cf), np.asarray(ref_cf),
                       atol=1e-4, rtol=1e-4)

    # --- channels_first with HW not 128-aligned -> sublane fallback ---
    x_cf2 = jax.random.normal(k2, (N, C, 10, 10), jnp.float32)
    out_cf2 = jax.block_until_ready(
        layer_norm_channels_first(x_cf2, weight, bias, eps))
    ref_cf2 = _ref_channels_first(x_cf2, weight, bias, eps)
    assert np.allclose(np.asarray(out_cf2), np.asarray(ref_cf2),
                       atol=1e-4, rtol=1e-4)

    # --- channels_last (NHWC), small C -> lane-packed kernel ---
    x_cl = jax.random.normal(k2, (N, H, W, C), jnp.float32)
    out_cl = jax.block_until_ready(
        layer_norm_channels_last(x_cl, weight, bias, eps))
    ref_cl = _ref_channels_last(x_cl, weight, bias, eps)
    assert np.allclose(np.asarray(out_cl), np.asarray(ref_cl),
                       atol=5e-4, rtol=5e-4)   # margin for MXU-based reduction

    # --- channels_last, C = 192 -> lcm-packed (v6e/v7x) or generic (v5e) ---
    C2 = 192
    w_big = jnp.ones((C2,), jnp.float32) + 0.1 * jax.random.normal(k5, (C2,))
    b_big = jnp.zeros((C2,), jnp.float32)
    x_cl2 = jax.random.normal(k1, (2, 8, 8, C2), jnp.float32)
    out_cl2 = jax.block_until_ready(
        layer_norm_channels_last(x_cl2, w_big, b_big, eps))
    ref_cl2 = _ref_channels_last(x_cl2, w_big, b_big, eps)
    assert np.allclose(np.asarray(out_cl2), np.asarray(ref_cl2),
                       atol=5e-4, rtol=5e-4)

    print("KERNEL_OK")
</pallas_src>

<mosaic_0001>
module attributes {stable_mosaic.version = 11 : i64} {
  func.func @_ln_cf_spatial_kernel(%arg0: i32, %arg1: i32, %arg2: memref<1x4x2x128xf32, #tpu.memory_space<vmem>>, %arg3: memref<1x4x1x128xf32, #tpu.memory_space<vmem>>, %arg4: memref<1x4x1x128xf32, #tpu.memory_space<vmem>>, %arg5: memref<1x4x2x128xf32, #tpu.memory_space<vmem>>) attributes {dimension_semantics = [#tpu.dimension_semantics<parallel>, #tpu.dimension_semantics<parallel>], iteration_bounds = array<i64: 2, 1>, scalar_prefetch = 0 : i64, scratch_operands = 0 : i64, tpu.core_type = #tpu.core_type<tc>, window_params = [{transform_indices = @transform_0, window_bounds = array<i64: 1, 4, 2, 128>}, {pipeline_mode = #tpu.pipeline_mode<synchronous>, transform_indices = @transform_1, window_bounds = array<i64: 1, 4, 1, 128>}, {pipeline_mode = #tpu.pipeline_mode<synchronous>, transform_indices = @transform_2, window_bounds = array<i64: 1, 4, 1, 128>}, {transform_indices = @transform_3, window_bounds = array<i64: 1, 4, 2, 128>}]} {
    %c0 = arith.constant 0 : index
    %c0_0 = arith.constant 0 : index
    %c0_1 = arith.constant 0 : index
    %c0_2 = arith.constant 0 : index
    %0 = vector.load %arg2[%c0, %c0_0, %c0_1, %c0_2] : memref<1x4x2x128xf32, #tpu.memory_space<vmem>>, vector<1x4x2x128xf32>
    %1 = vector.extract_strided_slice %0 {offsets = [0, 0, 0, 0], sizes = [1, 1, 2, 128], strides = [1, 1, 1, 1]} : vector<1x4x2x128xf32> to vector<1x1x2x128xf32>
    %2 = vector.extract_strided_slice %0 {offsets = [0, 1, 0, 0], sizes = [1, 1, 2, 128], strides = [1, 1, 1, 1]} : vector<1x4x2x128xf32> to vector<1x1x2x128xf32>
    %3 = arith.addf %1, %2 : vector<1x1x2x128xf32>
    %4 = vector.extract_strided_slice %0 {offsets = [0, 2, 0, 0], sizes = [1, 1, 2, 128], strides = [1, 1, 1, 1]} : vector<1x4x2x128xf32> to vector<1x1x2x128xf32>
    %5 = arith.addf %3, %4 : vector<1x1x2x128xf32>
    %6 = vector.extract_strided_slice %0 {offsets = [0, 3, 0, 0], sizes = [1, 1, 2, 128], strides = [1, 1, 1, 1]} : vector<1x4x2x128xf32> to vector<1x1x2x128xf32>
    %7 = arith.addf %5, %6 : vector<1x1x2x128xf32>
    %cst = arith.constant 2.500000e-01 : f32
    %8 = vector.broadcast %cst : f32 to vector<1x1x2x128xf32>
    %9 = arith.mulf %7, %8 : vector<1x1x2x128xf32>
    %10 = vector.broadcast %9 : vector<1x1x2x128xf32> to vector<1x4x2x128xf32>
    %11 = arith.subf %0, %10 : vector<1x4x2x128xf32>
    %12 = arith.mulf %11, %11 : vector<1x4x2x128xf32>
    %13 = vector.extract_strided_slice %12 {offsets = [0, 0, 0, 0], sizes = [1, 1, 2, 128], strides = [1, 1, 1, 1]} : vector<1x4x2x128xf32> to vector<1x1x2x128xf32>
    %14 = vector.extract_strided_slice %12 {offsets = [0, 1, 0, 0], sizes = [1, 1, 2, 128], strides = [1, 1, 1, 1]} : vector<1x4x2x128xf32> to vector<1x1x2x128xf32>
    %15 = arith.addf %13, %14 : vector<1x1x2x128xf32>
    %16 = vector.extract_strided_slice %12 {offsets = [0, 2, 0, 0], sizes = [1, 1, 2, 128], strides = [1, 1, 1, 1]} : vector<1x4x2x128xf32> to vector<1x1x2x128xf32>
    %17 = arith.addf %15, %16 : vector<1x1x2x128xf32>
    %18 = vector.extract_strided_slice %12 {offsets = [0, 3, 0, 0], sizes = [1, 1, 2, 128], strides = [1, 1, 1, 1]} : vector<1x4x2x128xf32> to vector<1x1x2x128xf32>
    %19 = arith.addf %17, %18 : vector<1x1x2x128xf32>
    %cst_3 = arith.constant 2.500000e-01 : f32
    %20 = vector.broadcast %cst_3 : f32 to vector<1x1x2x128xf32>
    %21 = arith.mulf %19, %20 : vector<1x1x2x128xf32>
    %cst_4 = arith.constant 9.99999997E-7 : f32
    %22 = vector.broadcast %cst_4 : f32 to vector<1x1x2x128xf32>
    %23 = arith.addf %21, %22 : vector<1x1x2x128xf32>
    %24 = math.rsqrt %23 : vector<1x1x2x128xf32>
    %c0_5 = arith.constant 0 : index
    %c0_6 = arith.constant 0 : index
    %c0_7 = arith.constant 0 : index
    %c0_8 = arith.constant 0 : index
    %25 = vector.load %arg3[%c0_5, %c0_6, %c0_7, %c0_8] : memref<1x4x1x128xf32, #tpu.memory_space<vmem>>, vector<1x4x1x128xf32>
    %c0_9 = arith.constant 0 : index
    %c0_10 = arith.constant 0 : index
    %c0_11 = arith.constant 0 : index
    %c0_12 = arith.constant 0 : index
    %26 = vector.load %arg4[%c0_9, %c0_10, %c0_11, %c0_12] : memref<1x4x1x128xf32, #tpu.memory_space<vmem>>, vector<1x4x1x128xf32>
    %27 = vector.broadcast %24 : vector<1x1x2x128xf32> to vector<1x4x2x128xf32>
    %28 = arith.mulf %11, %27 : vector<1x4x2x128xf32>
    %29 = vector.broadcast %25 : vector<1x4x1x128xf32> to vector<1x4x2x128xf32>
    %30 = arith.mulf %29, %28 : vector<1x4x2x128xf32>
    %31 = vector.broadcast %26 : vector<1x4x1x128xf32> to vector<1x4x2x128xf32>
    %32 = arith.addf %30, %31 : vector<1x4x2x128xf32>
    %c0_13 = arith.constant 0 : index
    %c0_14 = arith.constant 0 : index
    %c0_15 = arith.constant 0 : index
    %c0_16 = arith.constant 0 : index
    %33 = vector.load %arg5[%c0_13, %c0_14, %c0_15, %c0_16] : memref<1x4x2x128xf32, #tpu.memory_space<vmem>>, vector<1x4x2x128xf32>
    tpu.vector_store %arg5[%c0_13, %c0_14, %c0_15, %c0_16], %32 {strides = array<i32>} : memref<1x4x2x128xf32, #tpu.memory_space<vmem>>, vector<1x4x2x128xf32>,
    return
  }
  func.func @transform_0(%arg0: i32, %arg1: i32) -> (i32, i32, i32, i32) {
    %c0_i32 = arith.constant 0 : i32
    %c0_i32_0 = arith.constant 0 : i32
    %c0_i32_1 = arith.constant 0 : i32
    return %arg0, %c0_i32, %arg1, %c0_i32_0 : i32, i32, i32, i32
  }
  func.func @transform_1(%arg0: i32, %arg1: i32) -> (i32, i32, i32, i32) {
    %c0_i32 = arith.constant 0 : i32
    %c0_i32_0 = arith.constant 0 : i32
    %c0_i32_1 = arith.constant 0 : i32
    %c0_i32_2 = arith.constant 0 : i32
    %c0_i32_3 = arith.constant 0 : i32
    return %c0_i32, %c0_i32_0, %c0_i32_1, %c0_i32_2 : i32, i32, i32, i32
  }
  func.func @transform_2(%arg0: i32, %arg1: i32) -> (i32, i32, i32, i32) {
    %c0_i32 = arith.constant 0 : i32
    %c0_i32_0 = arith.constant 0 : i32
    %c0_i32_1 = arith.constant 0 : i32
    %c0_i32_2 = arith.constant 0 : i32
    %c0_i32_3 = arith.constant 0 : i32
    return %c0_i32, %c0_i32_0, %c0_i32_1, %c0_i32_2 : i32, i32, i32, i32
  }
  func.func @transform_3(%arg0: i32, %arg1: i32) -> (i32, i32, i32, i32) {
    %c0_i32 = arith.constant 0 : i32
    %c0_i32_0 = arith.constant 0 : i32
    %c0_i32_1 = arith.constant 0 : i32
    return %arg0, %c0_i32, %arg1, %c0_i32_0 : i32, i32, i32, i32
  }
}

</mosaic_0001>

<llo_original>
// kernel: tpu_custom_call.1
$region0: #{tpu_custom_call.1}
  #allocation0 [shape = 'u32[]', space=smem, size = 0x4, offset = 0x4, fixed_abs, tag = 'smem constant byte address 0x4 - core index']
  #allocation1 [shape = 'u32[72,128]{1,0:T(1,128)}', space=vmem, size = 0x9000, scoped, tag = 'internal scratch']
  %s0 = inlined_call_operand.hbm [shape: f32[2,4,2,128], index: 0, kind: input, shape index: {}]
  %s1 = inlined_call_operand.hbm [shape: f32[1,4,1,128], index: 1, kind: input, shape index: {}]
  %s2 = inlined_call_operand.hbm [shape: f32[1,4,1,128], index: 2, kind: input, shape index: {}]
  %s3 = inlined_call_operand.hbm [shape: f32[2,4,2,128], index: 3, kind: output, shape index: {}]
  %s4 = sld [smem:[#allocation0]]
  $region57: #{tpu_custom_call.1} parent=0
    _
  %s6 = ssub.s32 1, %s4
  %s7 = scalar_select 0, %s6, %s4
  $region1: #{tpu_custom_call.1} parent=0
    #allocation2 [shape = 'u8[8192]{0}', space=vmem, size = 0x2000, scoped, tag = 'input window, operand 0']
    #allocation3 [shape = 's32[2]{0}', space=sflag, size = 0x8, scoped, tag = 'scoped memory for tpu_custom_call.1']
    #allocation4 [shape = 's32[2]{0}', space=sflag, size = 0x8, scoped, tag = 'scoped memory for tpu_custom_call.1']
    #allocation5 [shape = 'u8[2048]{0}', space=vmem, size = 0x800, scoped, tag = 'input window, operand 1, single buffered']
    #allocation6 [shape = 's32[1]{0}', space=sflag, size = 0x4, scoped, tag = 'scoped memory for tpu_custom_call.1']
    #allocation7 [shape = 'u8[2048]{0}', space=vmem, size = 0x800, scoped, tag = 'input window, operand 2, single buffered']
    #allocation8 [shape = 'u8[8192]{0}', space=vmem, size = 0x2000, scoped, tag = 'output window, operand 0']
    %8 = vsyncpa [#allocation3], 0
    %s9 = scalar_lea.sflag [#allocation3], 1
    %10 = vsyncpa %s9, 0
    %11 = vsyncpa [#allocation6], 0
    %12 = vsyncpa [#allocation4], 0
    %s13 = scalar_lea.sflag [#allocation4], 1
    %14 = vsyncpa %s13, 0
    loop: start=0, step=1, limit=4
    $region2: #{tpu_custom_call.1} parent=1 // loop_pre_header
      _
    $region3: #{tpu_custom_call.1} parent=1 // loop_header
      %s16 = sphi 0, %s20
      %p17 = scmp.ge.s32.totalorder %s16, 4
      %s23 = sphi 0, %s35
      %s24 = sphi 0, %s31
      %s25 = sphi 0, %s23
      %s26 = sphi 0, %s24
      %s27 = sphi 0, %s25
      %s28 = sphi 0, %s26
      %s40 = sphi 0, %s42
      %s43 = sphi 0, %s40
      %s44 = sphi 0, %s43
      %s60 = sphi 0, %s44
      %s64 = sphi 0, %s64
      %s66 = sphi 0, %s64
      %s67 = sphi 0, %s66
      %s81 = sphi 0, %s67
      %s85 = sphi 0, %s85
      %s87 = sphi 0, %s85
      %s88 = sphi 0, %s87
      %s102 = sphi 0, %s88
      %s110 = sphi 0, %s112
      %s113 = sphi 0, %s110
      %s114 = sphi 0, %s113
      %s130 = sphi 0, %s114
    $region4: #{tpu_custom_call.1} parent=1 // loop_header_branch
      %19 = sbr.rel (%p17) target = $region8
    $region5: #{tpu_custom_call.1} parent=1 // loop_body
      %s21 = ssub.s32 %s16, 1
      %s22 = ssub.s32 %s16, 2
      %s29 = sadd.s32 1, %s24
      %p30 = scmp.ge.s32.totalorder %s29, 1
      %s31 = scalar_select %p30, 0, %s29
      %s32 = sadd.s32 1, %s23
      %s33 = scalar_select %p30, %s32, %s23
      %p34 = scmp.ge.s32.totalorder %s33, 2
      %s35 = scalar_select %p34, 0, %s33
      %s36 = ssub.s32 %s23, %s35
      %s37 = ssub.s32 %s24, %s31
      %s38 = sor.u32 %s36, %s37
      %p39 = scmp.eq.s32.totalorder %s38, 0
      %s41 = sadd.s32 %s40, 1
      %s42 = scalar_select %p39, %s40, %s41
      %p45 = pneg %p39
      %p46 = scmp.eq.s32.totalorder %s16, 1
      %p47 = por %p45, %p46
      %p48 = scmp.ne.s32.totalorder %s40, %s43
      %p49 = scmp.eq.s32.totalorder %s16, 0
      %p50 = por %p48, %p49
      %p51 = scmp.ne.s32.totalorder %s40, %s43
      %p52 = scmp.eq.s32.totalorder %s21, 1
      %p53 = por %p51, %p52
      %p54 = scmp.ne.s32.totalorder %s43, %s44
      %p55 = scmp.eq.s32.totalorder %s21, 0
      %p56 = por %p54, %p55
      %p57 = scmp.ne.s32.totalorder %s43, %s44
      %p58 = scmp.eq.s32.totalorder %s22, 1
      %p59 = por %p57, %p58
      %p61 = scmp.ne.s32.totalorder %s44, %s60
      %p62 = scmp.eq.s32.totalorder %s22, 0
      %p63 = por %p61, %p62
      %s65 = sadd.s32 %s64, 1
      %p68 = scmp.eq.s32.totalorder %s16, 1
      %p69 = scmp.ne.s32.totalorder %s64, %s66
      %p70 = scmp.eq.s32.totalorder %s16, 0
      %p71 = por %p69, %p70
      %p72 = scmp.ne.s32.totalorder %s64, %s66
      %p73 = scmp.eq.s32.totalorder %s21, 1
      %p74 = por %p72, %p73
      %p75 = scmp.ne.s32.totalorder %s66, %s67
      %p76 = scmp.eq.s32.totalorder %s21, 0
      %p77 = por %p75, %p76
      %p78 = scmp.ne.s32.totalorder %s66, %s67
      %p79 = scmp.eq.s32.totalorder %s22, 1
      %p80 = por %p78, %p79
      %p82 = scmp.ne.s32.totalorder %s67, %s81
      %p83 = scmp.eq.s32.totalorder %s22, 0
      %p84 = por %p82, %p83
      %s86 = sadd.s32 %s85, 1
      %p89 = scmp.eq.s32.totalorder %s16, 1
      %p90 = scmp.ne.s32.totalorder %s85, %s87
      %p91 = scmp.eq.s32.totalorder %s16, 0
      %p92 = por %p90, %p91
      %p93 = scmp.ne.s32.totalorder %s85, %s87
      %p94 = scmp.eq.s32.totalorder %s21, 1
      %p95 = por %p93, %p94
      %p96 = scmp.ne.s32.totalorder %s87, %s88
      %p97 = scmp.eq.s32.totalorder %s21, 0
      %p98 = por %p96, %p97
      %p99 = scmp.ne.s32.totalorder %s87, %s88
      %p100 = scmp.eq.s32.totalorder %s22, 1
      %p101 = por %p99, %p100
      %p103 = scmp.ne.s32.totalorder %s88, %s102
      %p104 = scmp.eq.s32.totalorder %s22, 0
      %p105 = por %p103, %p104
      %s106 = ssub.s32 %s23, %s35
      %s107 = ssub.s32 %s24, %s31
      %s108 = sor.u32 %s106, %s107
      %p109 = scmp.eq.s32.totalorder %s108, 0
      %s111 = sadd.s32 %s110, 1
      %s112 = scalar_select %p109, %s110, %s111
      %p115 = pneg %p109
      %p116 = scmp.eq.s32.totalorder %s16, 1
      %p117 = por %p115, %p116
      %p118 = scmp.ne.s32.totalorder %s110, %s113
      %p119 = scmp.eq.s32.totalorder %s16, 0
      %p120 = por %p118, %p119
      %p121 = scmp.ne.s32.totalorder %s110, %s113
      %p122 = scmp.eq.s32.totalorder %s21, 1
      %p123 = por %p121, %p122
      %p124 = scmp.ne.s32.totalorder %s113, %s114
      %p125 = scmp.eq.s32.totalorder %s21, 0
      %p126 = por %p124, %p125
      %p127 = scmp.ne.s32.totalorder %s113, %s114
      %p128 = scmp.eq.s32.totalorder %s22, 1
      %p129 = por %p127, %p128
      %p131 = scmp.ne.s32.totalorder %s114, %s130
      %p132 = scmp.eq.s32.totalorder %s22, 0
      %p133 = por %p131, %p132
      %p134 = scmp.le.s32.totalorder 1, %s16
      %p135 = scmp.lt.s32.totalorder %s16, 3
      %p136 = pnand %p134, %p135
      %p137 = pneg %p136
      // Predicated region
      $region9: #{tpu_custom_call.1} parent=5 // pred_check
        _
      $region10: #{tpu_custom_call.1} parent=5 // pred_check_branch
        %139 = sbr.rel (%p136) target = $region12
      $region11: #{tpu_custom_call.1} parent=5 // pred_region
        %s140 = ssub.s32 %s16, 1
        // Predicated region
        $region13: #{tpu_custom_call.1} parent=11 // pred_check
          %p141 = pneg %p77
        $region14: #{tpu_custom_call.1} parent=11 // pred_check_branch
          %143 = sbr.rel (%p141) target = $region16
        $region15: #{tpu_custom_call.1} parent=11 // pred_region
          %145 = vsyncadd [#allocation6], 0
          %s146 = sshll.u32 %s1, 4
          %s147 = int_to_ptr.hbm [resolvable:$true] %s146
          %s148 = sshll.u32 [#allocation5], 4
          %s149 = int_to_ptr.vmem [resolvable:$true] %s148
          %154 = dma.hbm_to_vmem [thread:$0]  %s147, 64, %s149, [#allocation6], 16, 16, 1
        $region16: #{tpu_custom_call.1} parent=11 // pred_fallthru
          _
        // Predicated region
        $region17: #{tpu_custom_call.1} parent=11 // pred_check
          %p155 = pneg %p98
        $region18: #{tpu_custom_call.1} parent=11 // pred_check_branch
          %157 = sbr.rel (%p155) target = $region20
        $region19: #{tpu_custom_call.1} parent=11 // pred_region
          %159 = vsyncadd [#allocation6], 0
          %s160 = sshll.u32 %s2, 4
          %s161 = int_to_ptr.hbm [resolvable:$true] %s160
          %s162 = sshll.u32 [#allocation7], 4
          %s163 = int_to_ptr.vmem [resolvable:$true] %s162
          %168 = dma.hbm_to_vmem [thread:$0]  %s161, 64, %s163, [#allocation6], 16, 16, 1
        $region20: #{tpu_custom_call.1} parent=11 // pred_fallthru
          _
      $region12: #{tpu_custom_call.1} parent=5 // pred_fallthru
        _
      %p169 = scmp.lt.s32.totalorder %s16, 2
      // Predicated region
      $region21: #{tpu_custom_call.1} parent=5 // pred_check
        %p170 = pneg %p169
      $region22: #{tpu_custom_call.1} parent=5 // pred_check_branch
        %172 = sbr.rel (%p170) target = $region24
      $region23: #{tpu_custom_call.1} parent=5 // pred_region
        // Predicated region
        $region25: #{tpu_custom_call.1} parent=23 // pred_check
          %p173 = pneg %p50
        $region26: #{tpu_custom_call.1} parent=23 // pred_check_branch
          %175 = sbr.rel (%p173) target = $region28
        $region27: #{tpu_custom_call.1} parent=23 // pred_region
          %s176 = sand.u32 %s40, 1
          %s177 = scalar_lea.sflag [#allocation3], %s176
          %s178 = sand.u32 %s40, 1
          %s179 = smul.addr %s178, 8
          %s180 = scalar_lea.vmem [#allocation2], %s179
          %182 = vsyncadd %s177, 0
          %s183 = smul.addr %s23, 4
          %s184 = sadd.s32 %s24, %s183
          %s185 = smul.addr %s184, 2
          %s186 = scalar_lea.hbm %s0, %s185
          %s187 = sshll.u32 %s186, 4
          %s188 = int_to_ptr.hbm [resolvable:$true] %s187
          %s189 = sshll.u32 %s180, 4
          %s190 = int_to_ptr.vmem [resolvable:$true] %s189
          %195 = dma.hbm_to_vmem [thread:$0]  %s188, 128, %s190, %s177, 32, 32, 2
        $region28: #{tpu_custom_call.1} parent=23 // pred_fallthru
          _
      $region24: #{tpu_custom_call.1} parent=5 // pred_fallthru
        _
      %p196 = scmp.le.s32.totalorder 1, %s16
      %p197 = scmp.lt.s32.totalorder %s16, 3
      %p198 = pnand %p196, %p197
      %p199 = pneg %p198
      // Predicated region
      $region29: #{tpu_custom_call.1} parent=5 // pred_check
        _
      $region30: #{tpu_custom_call.1} parent=5 // pred_check_branch
        %201 = sbr.rel (%p198) target = $region32
      $region31: #{tpu_custom_call.1} parent=5 // pred_region
        %s202 = ssub.s32 %s16, 1
        %s203 = sand.u32 %s43, 1
        %s204 = scalar_lea.sflag [#allocation3], %s203
        %s205 = sand.u32 %s43, 1
        %s206 = smul.addr %s205, 8
        %s207 = scalar_lea.vmem [#allocation2], %s206
        // Predicated region
        $region33: #{tpu_custom_call.1} parent=31 // pred_check
          %p208 = pneg %p56
        $region34: #{tpu_custom_call.1} parent=31 // pred_check_branch
          %210 = sbr.rel (%p208) target = $region36
        $region35: #{tpu_custom_call.1} parent=31 // pred_region
          %212 = dma.done %s204, 128
        $region36: #{tpu_custom_call.1} parent=31 // pred_fallthru
          _
        // Predicated region
        $region37: #{tpu_custom_call.1} parent=31 // pred_check
          %p213 = pneg %p77
        $region38: #{tpu_custom_call.1} parent=31 // pred_check_branch
          %215 = sbr.rel (%p213) target = $region40
        $region39: #{tpu_custom_call.1} parent=31 // pred_region
          %217 = dma.done [#allocation6], 64
        $region40: #{tpu_custom_call.1} parent=31 // pred_fallthru
          _
        // Predicated region
        $region41: #{tpu_custom_call.1} parent=31 // pred_check
          %p218 = pneg %p98
        $region42: #{tpu_custom_call.1} parent=31 // pred_check_branch
          %220 = sbr.rel (%p218) target = $region44
        $region43: #{tpu_custom_call.1} parent=31 // pred_region
          %222 = dma.done [#allocation6], 64
        $region44: #{tpu_custom_call.1} parent=31 // pred_fallthru
          _
        %s223 = sand.u32 %s43, 1
        %s224 = scalar_lea.sflag [#allocation3], %s223
        %s225 = sand.u32 %s43, 1
        %s226 = smul.addr %s225, 8
        %s227 = scalar_lea.vmem [#allocation2], %s226
        %p228 = pneg %p56
        %p229 = pneg %p53
        %p230 = pneg %p77
        %p231 = pneg %p74
        %p232 = pneg %p98
        %p233 = pneg %p95
        %p234 = pneg %p126
        %p235 = pneg %p123
        %s236 = sand.u32 %s113, 1
        %s237 = scalar_lea.sflag [#allocation4], %s236
        %s238 = sand.u32 %s113, 1
        %s239 = smul.addr %s238, 8
        %s240 = scalar_lea.vmem [#allocation8], %s239
        %v241 = vld [vmem:[%s207] sm:$0x3]
        %v242 = vld [vmem:[%s207 + $0x2] sm:$0x3]
        %v243 = vld [vmem:[%s207 + $0x4] sm:$0x3]
        %v244 = vld [vmem:[%s207 + $0x6] sm:$0x3]
        %v245 = vadd.f32 %v241, %v242
        %v246 = vadd.f32 %v245, %v243
        %v247 = vadd.f32 %v246, %v244
        %v248 = vmul.f32 %v247, 0.25
        %v249 = vsub.f32 %v241, %v248
        %v250 = vsub.f32 %v242, %v248
        %v251 = vsub.f32 %v243, %v248
        %v252 = vsub.f32 %v244, %v248
        %v253 = vmul.f32 %v249, %v249
        %v254 = vmul.f32 %v250, %v250
        %v255 = vmul.f32 %v251, %v251
        %v256 = vmul.f32 %v252, %v252
        %v257 = vadd.f32 %v253, %v254
        %v258 = vadd.f32 %v257, %v255
        %v259 = vadd.f32 %v258, %v256
        %v260 = vmul.f32 %v259, 0.25
        %v261 = vadd.f32 %v260, 1e-06
        %v262 = vrsqrt.pop %v261
        %v263 = vmul.f32 %v262, %v261
        %v264 = vmul.f32 %v263, %v262
        %v265 = vmul.f32 0.5, %v264
        %v266 = vsub.f32 1.5, %v265
        %v267 = vmul.f32 %v262, %v266
        %vm268 = vweird.f32 %v261
        %vm269 = vweird.f32 %v262
        %vm270 = vmor %vm268, %vm269
        %v271 = vsel %vm270, %v262, %v267
        %v272 = vld [vmem:[#allocation5] sm:$0x1]
        %v273 = vld [vmem:[#allocation5 + $0x1] sm:$0x1]
        %v274 = vld [vmem:[#allocation5 + $0x2] sm:$0x1]
        %v275 = vld [vmem:[#allocation5 + $0x3] sm:$0x1]
        %v276 = vld [vmem:[#allocation7] sm:$0x1]
        %v277 = vld [vmem:[#allocation7 + $0x1] sm:$0x1]
        %v278 = vld [vmem:[#allocation7 + $0x2] sm:$0x1]
        %v279 = vld [vmem:[#allocation7 + $0x3] sm:$0x1]
        %v280 = vmul.f32 %v249, %v271
        %v281 = vmul.f32 %v250, %v271
        %v282 = vmul.f32 %v251, %v271
        %v283 = vmul.f32 %v252, %v271
        %v288 = vperm.slane %v272, 0
        %v289 = vperm.slane %v273, 0
        %v290 = vperm.slane %v274, 0
        %v291 = vperm.slane %v275, 0
        %v296 = vmul.f32 %v288, %v280
        %v297 = vmul.f32 %v289, %v281
        %v298 = vmul.f32 %v290, %v282
        %v299 = vmul.f32 %v291, %v283
        %v304 = vperm.slane %v276, 0
        %v305 = vperm.slane %v277, 0
        %v306 = vperm.slane %v278, 0
        %v307 = vperm.slane %v279, 0
        %v312 = vadd.f32 %v296, %v304
        %v313 = vadd.f32 %v297, %v305
        %v314 = vadd.f32 %v298, %v306
        %v315 = vadd.f32 %v299, %v307
        %316 = vst [vmem:[%s240] sm:$0x3] %v312
        %317 = vst [vmem:[%s240 + $0x2] sm:$0x3] %v313
        %318 = vst [vmem:[%s240 + $0x4] sm:$0x3] %v314
        %319 = vst [vmem:[%s240 + $0x6] sm:$0x3] %v315
        %s320 = sand.u32 %s113, 1
        %s321 = scalar_lea.sflag [#allocation4], %s320
        %s322 = sand.u32 %s113, 1
        %s323 = smul.addr %s322, 8
        %s324 = scalar_lea.vmem [#allocation8], %s323
        // Predicated region
        $region45: #{tpu_custom_call.1} parent=31 // pred_check
          %p325 = pneg %p123
        $region46: #{tpu_custom_call.1} parent=31 // pred_check_branch
          %327 = sbr.rel (%p325) target = $region48
        $region47: #{tpu_custom_call.1} parent=31 // pred_region
          %329 = vsyncadd %s321, 0
          %s330 = smul.addr %s25, 4
          %s331 = sadd.s32 %s26, %s330
          %s332 = smul.addr %s331, 2
          %s333 = scalar_lea.hbm %s3, %s332
          %s334 = sshll.u32 %s324, 4
          %s335 = int_to_ptr.vmem [resolvable:$true] %s334
          %s336 = sshll.u32 %s333, 4
          %s337 = int_to_ptr.hbm [resolvable:$true] %s336
          %342 = dma.vmem_to_hbm [thread:$0]  %s335, 128, %s337, %s321, 32, 32, 2
        $region48: #{tpu_custom_call.1} parent=31 // pred_fallthru
          _
      $region32: #{tpu_custom_call.1} parent=5 // pred_fallthru
        _
      %p343 = scmp.le.s32.totalorder 2, %s16
      // Predicated region
      $region49: #{tpu_custom_call.1} parent=5 // pred_check
        %p344 = pneg %p343
      $region50: #{tpu_custom_call.1} parent=5 // pred_check_branch
        %346 = sbr.rel (%p344) target = $region52
      $region51: #{tpu_custom_call.1} parent=5 // pred_region
        %s347 = ssub.s32 %s16, 2
        // Predicated region
        $region53: #{tpu_custom_call.1} parent=51 // pred_check
          %p348 = pneg %p129
        $region54: #{tpu_custom_call.1} parent=51 // pred_check_branch
          %350 = sbr.rel (%p348) target = $region56
        $region55: #{tpu_custom_call.1} parent=51 // pred_region
          %s351 = sand.u32 %s114, 1
          %s352 = scalar_lea.sflag [#allocation4], %s351
          %s353 = sand.u32 %s114, 1
          %s354 = smul.addr %s353, 8
          %s355 = scalar_lea.vmem [#allocation8], %s354
          %357 = dma.done %s352, 128
        $region56: #{tpu_custom_call.1} parent=51 // pred_fallthru
          _
      $region52: #{tpu_custom_call.1} parent=5 // pred_fallthru
        _
    $region6: #{tpu_custom_call.1} parent=1 // loop_footer
      %s20 = sadd.s32 1, %s16
    $region7: #{tpu_custom_call.1} parent=1 // loop_footer_branch
      %15 = sbr.rel target = $region3
    $region8: #{tpu_custom_call.1} parent=1 // loop_exit
      _
    %358 = vsyncpa [#allocation3], 1
    %s359 = scalar_lea.sflag [#allocation3], 1
    %360 = vsyncpa %s359, 1
    %361 = vsyncpa [#allocation6], 1
    %362 = vsyncpa [#allocation4], 1
    %s363 = scalar_lea.sflag [#allocation4], 1
    %364 = vsyncpa %s363, 1

</llo_original>
